<compile_context>
chip_gen: v6e
topology: v6e:2x2x1
jax: 0.10.0
libtpu: 0.0.40
codegen_flags: <defaults>
</compile_context>

<pallas_src>
import jax
import jax.numpy as jnp
from jax.experimental import pallas as pl
from jax.experimental.pallas import tpu as pltpu


def scale_permute_kernel(x_ref, s_ref, o_ref):
    # x_ref: (HW, C_blk) in VMEM   (channels on lanes)
    # s_ref: (1,  C_blk) in VMEM   (layer scale; sublane broadcast is free)
    # o_ref: (C_blk, HW) in VMEM   (lane-dense output, HW = 196 on lanes)
    #
    # PERF GUARD: keep the multiply BEFORE the transpose.  With C on lanes the
    # scale is a free VPU op hidden under the XLU transpose; moving it after
    # the transpose turns it into an XLU lane-broadcast that serializes with
    # the transpose on the same unit.
    y = x_ref[...] * s_ref[...]
    o_ref[...] = y.T                     # single 2D (HW, C_blk) -> (C_blk, HW)


def _has_two_tensorcores():
    """v7x has 2 TensorCores per chip; v5e/v6e have 1."""
    try:
        kind = jax.devices()[0].device_kind.lower()
        return "v7" in kind
    except Exception:
        return False


def layer_scale_permute(x_nhwc, scale_c):
    """x_nhwc: (1, H, W, C) f32, scale_c: (C,) f32 -> (1, C, H, W) f32.

    Matches torch: layer_scale[C,1,1] * permute(x, [0,3,1,2]).
    """
    N, H, W, C = x_nhwc.shape
    assert N == 1, "kernel specialized to batch 1 (matches module spec)"
    HW = H * W

    x2d = x_nhwc.reshape(HW, C)          # free: array is contiguous in HBM
    s2d = scale_c.reshape(1, C)

    itemsize = jnp.dtype(x_nhwc.dtype).itemsize
    cost = pl.CostEstimate(
        flops=HW * C,                                   # one mul per element
        transcendentals=0,
        bytes_accessed=(2 * HW * C + C) * itemsize,     # read x, write out, read scale
    )

    use_grid = _has_two_tensorcores() and (C % 128 == 0) and (C // 128 >= 2)

    if use_grid:
        # v7x: shard 3 C-blocks of 128 across both TensorCores and pipeline DMA.
        # Block shapes satisfy the (8,128) rule: 196 == full dim, 128 % 128 == 0.
        c_blk = 128
        out2d = pl.pallas_call(
            scale_permute_kernel,
            out_shape=jax.ShapeDtypeStruct((C, HW), x_nhwc.dtype),
            grid=(C // c_blk,),
            in_specs=[
                pl.BlockSpec((HW, c_blk), lambda i: (0, i)),
                pl.BlockSpec((1, c_blk), lambda i: (0, i)),
            ],
            out_specs=pl.BlockSpec((c_blk, HW), lambda i: (i, 0)),
            compiler_params=pltpu.CompilerParams(
                dimension_semantics=("parallel",)),
            cost_estimate=cost,
        )(x2d, s2d)
    else:
        # v5e / v6e: single TC -> single whole-array block, no grid.
        # ~0.6 MiB total; trivially inside scoped VMEM on every generation.
        out2d = pl.pallas_call(
            scale_permute_kernel,
            out_shape=jax.ShapeDtypeStruct((C, HW), x_nhwc.dtype),
            in_specs=[
                pl.BlockSpec(memory_space=pltpu.MemorySpace.VMEM),
                pl.BlockSpec(memory_space=pltpu.MemorySpace.VMEM),
            ],
            out_specs=pl.BlockSpec(memory_space=pltpu.MemorySpace.VMEM),
            cost_estimate=cost,
        )(x2d, s2d)

    # free reshape back to NCHW (row-major: (C, H*W) -> (1, C, H, W))
    return out2d.reshape(N, C, H, W)


if __name__ == "__main__":
    key = jax.random.PRNGKey(0)
    k_x, k_s = jax.random.split(key)

    # Shapes from the module: x212 ~ [1, 14, 14, 384], layer_scale17 ~ [384, 1, 1]
    N, H, W, C = 1, 14, 14, 384
    x = jax.random.normal(k_x, (N, H, W, C), dtype=jnp.float32)
    layer_scale = jax.random.uniform(k_s, (C,), dtype=jnp.float32)  # torch.rand analog

    out = layer_scale_permute(x, layer_scale)
    out = jax.block_until_ready(out)

    # Reference (plain JAX): permute then broadcast multiply, same as torch module
    ref = jnp.transpose(x, (0, 3, 1, 2)) * layer_scale[None, :, None, None]
    assert out.shape == (N, C, H, W)
    assert jnp.allclose(out, ref, atol=1e-6, rtol=1e-6)

    print("KERNEL_OK")
</pallas_src>

<mosaic_0001>
module attributes {stable_mosaic.version = 11 : i64} {
  func.func @scale_permute_kernel(%arg0: memref<196x384xf32, #tpu.memory_space<vmem>>, %arg1: memref<1x384xf32, #tpu.memory_space<vmem>>, %arg2: memref<384x196xf32, #tpu.memory_space<vmem>>) attributes {dimension_semantics = [], scalar_prefetch = 0 : i64, scratch_operands = 0 : i64, tpu.core_type = #tpu.core_type<tc>} {
    %c0 = arith.constant 0 : index
    %c0_0 = arith.constant 0 : index
    %0 = vector.load %arg0[%c0, %c0_0] : memref<196x384xf32, #tpu.memory_space<vmem>>, vector<196x384xf32>
    %c0_1 = arith.constant 0 : index
    %c0_2 = arith.constant 0 : index
    %1 = vector.load %arg1[%c0_1, %c0_2] : memref<1x384xf32, #tpu.memory_space<vmem>>, vector<1x384xf32>
    %2 = vector.broadcast %1 : vector<1x384xf32> to vector<196x384xf32>
    %3 = arith.mulf %0, %2 : vector<196x384xf32>
    %4 = tpu.transpose %3, [1, 0] : vector<196x384xf32> -> vector<384x196xf32>
    %c0_3 = arith.constant 0 : index
    %c0_4 = arith.constant 0 : index
    %5 = vector.load %arg2[%c0_3, %c0_4] : memref<384x196xf32, #tpu.memory_space<vmem>>, vector<384x196xf32>
    tpu.vector_store %arg2[%c0_3, %c0_4], %4 {strides = array<i32>} : memref<384x196xf32, #tpu.memory_space<vmem>>, vector<384x196xf32>,
    return
  }
}

</mosaic_0001>

<llo_original>
// kernel: tpu_custom_call.1
$region0: #{tpu_custom_call.1}
  #allocation0 [shape = 'u32[]', space=smem, size = 0x4, offset = 0x4, fixed_abs, tag = 'smem constant byte address 0x4 - core index']
  #allocation1 [shape = 'u32[144,128]{1,0:T(1,128)}', space=vmem, size = 0x12000, scoped, tag = 'internal scratch']
  %s0 = inlined_call_operand.hbm [shape: f32[196,384], index: 0, kind: input, shape index: {}]
  %s1 = inlined_call_operand.hbm [shape: f32[1,384], index: 1, kind: input, shape index: {}]
  %s2 = inlined_call_operand.vmem [shape: f32[384,196], index: 2, kind: output, shape index: {}]
  %s3 = sld [smem:[#allocation0]]
  $region26: #{tpu_custom_call.1} parent=0
    _
  %s5 = ssub.s32 1, %s3
  %s6 = scalar_select 0, %s5, %s3
  $region1: #{tpu_custom_call.1} parent=0
    #allocation2 [shape = 'u8[307200]{0}', space=vmem, size = 0x4b000, scoped, tag = 'input window, operand 0, single buffered']
    #allocation3 [shape = 's32[1]{0}', space=sflag, size = 0x4, scoped, tag = 'scoped memory for tpu_custom_call.1']
    #allocation4 [shape = 'u8[1536]{0}', space=vmem, size = 0x800, scoped, tag = 'input window, operand 1, single buffered']
    #allocation5 [shape = 's32[1]{0}', space=sflag, size = 0x4, scoped, tag = 'scoped memory for tpu_custom_call.1']
    %7 = vsyncpa [#allocation3], 0
    %8 = vsyncpa [#allocation5], 0
    // Predicated region
    $region2: #{tpu_custom_call.1} parent=1 // pred_check
      _
    $region3: #{tpu_custom_call.1} parent=1 // pred_check_branch
      %10 = sbr.rel (0) target = $region5
    $region4: #{tpu_custom_call.1} parent=1 // pred_region
      %s12 = ssub.s32 9600, 9600
      %13 = vsyncadd [#allocation3], %s12
      %s14 = sshll.u32 [#allocation2], 4
      %s15 = int_to_ptr.vmem [resolvable:$true] %s14
      %20 = dma.hbm_to_vmem [thread:$0]  %s0, 9600, %s15, [#allocation3], 384, 384, 24
    $region5: #{tpu_custom_call.1} parent=1 // pred_fallthru
      _
    // Predicated region
    $region6: #{tpu_custom_call.1} parent=1 // pred_check
      _
    $region7: #{tpu_custom_call.1} parent=1 // pred_check_branch
      %22 = sbr.rel (0) target = $region9
    $region8: #{tpu_custom_call.1} parent=1 // pred_region
      %s24 = ssub.s32 48, 48
      %25 = vsyncadd [#allocation5], %s24
      %s27 = sshll.u32 [#allocation4], 4
      %s28 = int_to_ptr.vmem [resolvable:$true] %s27
      %30 = dma.hbm_to_vmem [thread:$0]  %s1, 48, %s28, [#allocation5]
    $region9: #{tpu_custom_call.1} parent=1 // pred_fallthru
      _
    // Predicated region
    $region10: #{tpu_custom_call.1} parent=1 // pred_check
      _
    $region11: #{tpu_custom_call.1} parent=1 // pred_check_branch
      %32 = sbr.rel (0) target = $region13
    $region12: #{tpu_custom_call.1} parent=1 // pred_region
      %33 = dma.done [#allocation3], 9600
    $region13: #{tpu_custom_call.1} parent=1 // pred_fallthru
      _
    // Predicated region
    $region14: #{tpu_custom_call.1} parent=1 // pred_check
      _
    $region15: #{tpu_custom_call.1} parent=1 // pred_check_branch
      %35 = sbr.rel (0) target = $region17
    $region16: #{tpu_custom_call.1} parent=1 // pred_region
      %36 = dma.done [#allocation5], 48
    $region17: #{tpu_custom_call.1} parent=1 // pred_fallthru
      _
    %v37 = vld [vmem:[#allocation2] sm:$0xff]
    %v38 = vld [vmem:[#allocation2 + $0x8] sm:$0xff]
    %v39 = vld [vmem:[#allocation2 + $0x10] sm:$0xff]
    %v40 = vld [vmem:[#allocation2 + $0x18] sm:$0xff]
    %v41 = vld [vmem:[#allocation2 + $0x20] sm:$0xff]
    %v42 = vld [vmem:[#allocation2 + $0x28] sm:$0xff]
    %v43 = vld [vmem:[#allocation2 + $0x30] sm:$0xff]
    %v44 = vld [vmem:[#allocation2 + $0x38] sm:$0xff]
    %v45 = vld [vmem:[#allocation2 + $0x40] sm:$0xff]
    %v46 = vld [vmem:[#allocation2 + $0x48] sm:$0xff]
    %v47 = vld [vmem:[#allocation2 + $0x50] sm:$0xff]
    %v48 = vld [vmem:[#allocation2 + $0x58] sm:$0xff]
    %v49 = vld [vmem:[#allocation2 + $0x60] sm:$0xff]
    %v50 = vld [vmem:[#allocation2 + $0x68] sm:$0xff]
    %v51 = vld [vmem:[#allocation2 + $0x70] sm:$0xff]
    %v52 = vld [vmem:[#allocation2 + $0x78] sm:$0xff]
    %v53 = vld [vmem:[#allocation2 + $0x80] sm:$0xff]
    %v54 = vld [vmem:[#allocation2 + $0x88] sm:$0xff]
    %v55 = vld [vmem:[#allocation2 + $0x90] sm:$0xff]
    %v56 = vld [vmem:[#allocation2 + $0x98] sm:$0xff]
    %v57 = vld [vmem:[#allocation2 + $0xa0] sm:$0xff]
    %v58 = vld [vmem:[#allocation2 + $0xa8] sm:$0xff]
    %v59 = vld [vmem:[#allocation2 + $0xb0] sm:$0xff]
    %v60 = vld [vmem:[#allocation2 + $0xb8] sm:$0xff]
    %v61 = vld [vmem:[#allocation2 + $0xc0] sm:$0xff]
    %v62 = vld [vmem:[#allocation2 + $0xc8] sm:$0xff]
    %v63 = vld [vmem:[#allocation2 + $0xd0] sm:$0xff]
    %v64 = vld [vmem:[#allocation2 + $0xd8] sm:$0xff]
    %v65 = vld [vmem:[#allocation2 + $0xe0] sm:$0xff]
    %v66 = vld [vmem:[#allocation2 + $0xe8] sm:$0xff]
    %v67 = vld [vmem:[#allocation2 + $0xf0] sm:$0xff]
    %v68 = vld [vmem:[#allocation2 + $0xf8] sm:$0xff]
    %v69 = vld [vmem:[#allocation2 + $0x100] sm:$0xff]
    %v70 = vld [vmem:[#allocation2 + $0x108] sm:$0xff]
    %v71 = vld [vmem:[#allocation2 + $0x110] sm:$0xff]
    %v72 = vld [vmem:[#allocation2 + $0x118] sm:$0xff]
    %v73 = vld [vmem:[#allocation2 + $0x120] sm:$0xff]
    %v74 = vld [vmem:[#allocation2 + $0x128] sm:$0xff]
    %v75 = vld [vmem:[#allocation2 + $0x130] sm:$0xff]
    %v76 = vld [vmem:[#allocation2 + $0x138] sm:$0xff]
    %v77 = vld [vmem:[#allocation2 + $0x140] sm:$0xff]
    %v78 = vld [vmem:[#allocation2 + $0x148] sm:$0xff]
    %v79 = vld [vmem:[#allocation2 + $0x150] sm:$0xff]
    %v80 = vld [vmem:[#allocation2 + $0x158] sm:$0xff]
    %v81 = vld [vmem:[#allocation2 + $0x160] sm:$0xff]
    %v82 = vld [vmem:[#allocation2 + $0x168] sm:$0xff]
    %v83 = vld [vmem:[#allocation2 + $0x170] sm:$0xff]
    %v84 = vld [vmem:[#allocation2 + $0x178] sm:$0xff]
    %v85 = vld [vmem:[#allocation2 + $0x180] sm:$0xff]
    %v86 = vld [vmem:[#allocation2 + $0x188] sm:$0xff]
    %v87 = vld [vmem:[#allocation2 + $0x190] sm:$0xff]
    %v88 = vld [vmem:[#allocation2 + $0x198] sm:$0xff]
    %v89 = vld [vmem:[#allocation2 + $0x1a0] sm:$0xff]
    %v90 = vld [vmem:[#allocation2 + $0x1a8] sm:$0xff]
    %v91 = vld [vmem:[#allocation2 + $0x1b0] sm:$0xff]
    %v92 = vld [vmem:[#allocation2 + $0x1b8] sm:$0xff]
    %v93 = vld [vmem:[#allocation2 + $0x1c0] sm:$0xff]
    %v94 = vld [vmem:[#allocation2 + $0x1c8] sm:$0xff]
    %v95 = vld [vmem:[#allocation2 + $0x1d0] sm:$0xff]
    %v96 = vld [vmem:[#allocation2 + $0x1d8] sm:$0xff]
    %v97 = vld [vmem:[#allocation2 + $0x1e0] sm:$0xff]
    %v98 = vld [vmem:[#allocation2 + $0x1e8] sm:$0xff]
    %v99 = vld [vmem:[#allocation2 + $0x1f0] sm:$0xff]
    %v100 = vld [vmem:[#allocation2 + $0x1f8] sm:$0xff]
    %v101 = vld [vmem:[#allocation2 + $0x200] sm:$0xff]
    %v102 = vld [vmem:[#allocation2 + $0x208] sm:$0xff]
    %v103 = vld [vmem:[#allocation2 + $0x210] sm:$0xff]
    %v104 = vld [vmem:[#allocation2 + $0x218] sm:$0xff]
    %v105 = vld [vmem:[#allocation2 + $0x220] sm:$0xff]
    %v106 = vld [vmem:[#allocation2 + $0x228] sm:$0xff]
    %v107 = vld [vmem:[#allocation2 + $0x230] sm:$0xff]
    %v108 = vld [vmem:[#allocation2 + $0x238] sm:$0xff]
    %v109 = vld [vmem:[#allocation2 + $0x240] sm:$0xf]
    %v110 = vld [vmem:[#allocation2 + $0x248] sm:$0xf]
    %v111 = vld [vmem:[#allocation2 + $0x250] sm:$0xf]
    %v112 = vld [vmem:[#allocation4] sm:$0x7]
    %v114 = vlaneseq
    %v115 = vshrl.u32 %v114, 7
    %v116 = vsub.s32 0, %v115
    %v117 = vrot.slane %v112, %v116
    %v118 = vlaneseq
    %v119 = vshrl.u32 %v118, 7
    %v120 = vsub.s32 1, %v119
    %v121 = vrot.slane %v112, %v120
    %v122 = vlaneseq
    %v123 = vshrl.u32 %v122, 7
    %v124 = vsub.s32 2, %v123
    %v125 = vrot.slane %v112, %v124
    %v129 = vmul.f32 %v37, %v117
    %v130 = vmul.f32 %v38, %v121
    %v131 = vmul.f32 %v39, %v125
    %v132 = vmul.f32 %v40, %v117
    %v133 = vmul.f32 %v41, %v121
    %v134 = vmul.f32 %v42, %v125
    %v135 = vmul.f32 %v43, %v117
    %v136 = vmul.f32 %v44, %v121
    %v137 = vmul.f32 %v45, %v125
    %v138 = vmul.f32 %v46, %v117
    %v139 = vmul.f32 %v47, %v121
    %v140 = vmul.f32 %v48, %v125
    %v141 = vmul.f32 %v49, %v117
    %v142 = vmul.f32 %v50, %v121
    %v143 = vmul.f32 %v51, %v125
    %v144 = vmul.f32 %v52, %v117
    %v145 = vmul.f32 %v53, %v121
    %v146 = vmul.f32 %v54, %v125
    %v147 = vmul.f32 %v55, %v117
    %v148 = vmul.f32 %v56, %v121
    %v149 = vmul.f32 %v57, %v125
    %v150 = vmul.f32 %v58, %v117
    %v151 = vmul.f32 %v59, %v121
    %v152 = vmul.f32 %v60, %v125
    %v153 = vmul.f32 %v61, %v117
    %v154 = vmul.f32 %v62, %v121
    %v155 = vmul.f32 %v63, %v125
    %v156 = vmul.f32 %v64, %v117
    %v157 = vmul.f32 %v65, %v121
    %v158 = vmul.f32 %v66, %v125
    %v159 = vmul.f32 %v67, %v117
    %v160 = vmul.f32 %v68, %v121
    %v161 = vmul.f32 %v69, %v125
    %v162 = vmul.f32 %v70, %v117
    %v163 = vmul.f32 %v71, %v121
    %v164 = vmul.f32 %v72, %v125
    %v165 = vmul.f32 %v73, %v117
    %v166 = vmul.f32 %v74, %v121
    %v167 = vmul.f32 %v75, %v125
    %v168 = vmul.f32 %v76, %v117
    %v169 = vmul.f32 %v77, %v121
    %v170 = vmul.f32 %v78, %v125
    %v171 = vmul.f32 %v79, %v117
    %v172 = vmul.f32 %v80, %v121
    %v173 = vmul.f32 %v81, %v125
    %v174 = vmul.f32 %v82, %v117
    %v175 = vmul.f32 %v83, %v121
    %v176 = vmul.f32 %v84, %v125
    %v177 = vmul.f32 %v85, %v117
    %v178 = vmul.f32 %v86, %v121
    %v179 = vmul.f32 %v87, %v125
    %v180 = vmul.f32 %v88, %v117
    %v181 = vmul.f32 %v89, %v121
    %v182 = vmul.f32 %v90, %v125
    %v183 = vmul.f32 %v91, %v117
    %v184 = vmul.f32 %v92, %v121
    %v185 = vmul.f32 %v93, %v125
    %v186 = vmul.f32 %v94, %v117
    %v187 = vmul.f32 %v95, %v121
    %v188 = vmul.f32 %v96, %v125
    %v189 = vmul.f32 %v97, %v117
    %v190 = vmul.f32 %v98, %v121
    %v191 = vmul.f32 %v99, %v125
    %v192 = vmul.f32 %v100, %v117
    %v193 = vmul.f32 %v101, %v121
    %v194 = vmul.f32 %v102, %v125
    %v195 = vmul.f32 %v103, %v117
    %v196 = vmul.f32 %v104, %v121
    %v197 = vmul.f32 %v105, %v125
    %v198 = vmul.f32 %v106, %v117
    %v199 = vmul.f32 %v107, %v121
    %v200 = vmul.f32 %v108, %v125
    %v201 = vmul.f32 %v109, %v117
    %v202 = vmul.f32 %v110, %v121
    %v203 = vmul.f32 %v111, %v125
    %204 = vxpose.xlu0.b32.start [1/16] %v129, 128
    %205 = vxpose.xlu0.b32.cont [2/16] %v132, 128
    %206 = vxpose.xlu0.b32.cont [3/16] %v135, 128
    %207 = vxpose.xlu0.b32.cont [4/16] %v138, 128
    %208 = vxpose.xlu0.b32.cont [5/16] %v141, 128
    %209 = vxpose.xlu0.b32.cont [6/16] %v144, 128
    %210 = vxpose.xlu0.b32.cont [7/16] %v147, 128
    %211 = vxpose.xlu0.b32.cont [8/16] %v150, 128
    %212 = vxpose.xlu0.b32.cont [9/16] %v153, 128
    %213 = vxpose.xlu0.b32.cont [10/16] %v156, 128
    %214 = vxpose.xlu0.b32.cont [11/16] %v159, 128
    %215 = vxpose.xlu0.b32.cont [12/16] %v162, 128
    %216 = vxpose.xlu0.b32.cont [13/16] %v165, 128
    %217 = vxpose.xlu0.b32.cont [14/16] %v168, 128
    %218 = vxpose.xlu0.b32.cont [15/16] %v171, 128
    %219 = vxpose.xlu0.b32.end [16/16] %v174, 128
    %v220 = vpop.trf.xlu0
    %v221 = vpop.trf.xlu0
    %v222 = vpop.trf.xlu0
    %v223 = vpop.trf.xlu0
    %v224 = vpop.trf.xlu0
    %v225 = vpop.trf.xlu0
    %v226 = vpop.trf.xlu0
    %v227 = vpop.trf.xlu0
    %v228 = vpop.trf.xlu0
    %v229 = vpop.trf.xlu0
    %v230 = vpop.trf.xlu0
    %v231 = vpop.trf.xlu0
    %v232 = vpop.trf.xlu0
    %v233 = vpop.trf.xlu0
    %v234 = vpop.trf.xlu0
    %v235 = vpop.trf.xlu0
    %236 = vxpose.xlu0.b32.start [1/16] %v130, 128
    %237 = vxpose.xlu0.b32.cont [2/16] %v133, 128
    %238 = vxpose.xlu0.b32.cont [3/16] %v136, 128
    %239 = vxpose.xlu0.b32.cont [4/16] %v139, 128
    %240 = vxpose.xlu0.b32.cont [5/16] %v142, 128
    %241 = vxpose.xlu0.b32.cont [6/16] %v145, 128
    %242 = vxpose.xlu0.b32.cont [7/16] %v148, 128
    %243 = vxpose.xlu0.b32.cont [8/16] %v151, 128
    %244 = vxpose.xlu0.b32.cont [9/16] %v154, 128
    %245 = vxpose.xlu0.b32.cont [10/16] %v157, 128
    %246 = vxpose.xlu0.b32.cont [11/16] %v160, 128
    %247 = vxpose.xlu0.b32.cont [12/16] %v163, 128
    %248 = vxpose.xlu0.b32.cont [13/16] %v166, 128
    %249 = vxpose.xlu0.b32.cont [14/16] %v169, 128
    %250 = vxpose.xlu0.b32.cont [15/16] %v172, 128
    %251 = vxpose.xlu0.b32.end [16/16] %v175, 128
    %v252 = vpop.trf.xlu0
    %v253 = vpop.trf.xlu0
    %v254 = vpop.trf.xlu0
    %v255 = vpop.trf.xlu0
    %v256 = vpop.trf.xlu0
    %v257 = vpop.trf.xlu0
    %v258 = vpop.trf.xlu0
    %v259 = vpop.trf.xlu0
    %v260 = vpop.trf.xlu0
    %v261 = vpop.trf.xlu0
    %v262 = vpop.trf.xlu0
    %v263 = vpop.trf.xlu0
    %v264 = vpop.trf.xlu0
    %v265 = vpop.trf.xlu0
    %v266 = vpop.trf.xlu0
    %v267 = vpop.trf.xlu0
    %268 = vxpose.xlu0.b32.start [1/16] %v131, 128
    %269 = vxpose.xlu0.b32.cont [2/16] %v134, 128
    %270 = vxpose.xlu0.b32.cont [3/16] %v137, 128
    %271 = vxpose.xlu0.b32.cont [4/16] %v140, 128
    %272 = vxpose.xlu0.b32.cont [5/16] %v143, 128
    %273 = vxpose.xlu0.b32.cont [6/16] %v146, 128
    %274 = vxpose.xlu0.b32.cont [7/16] %v149, 128
    %275 = vxpose.xlu0.b32.cont [8/16] %v152, 128
    %276 = vxpose.xlu0.b32.cont [9/16] %v155, 128
    %277 = vxpose.xlu0.b32.cont [10/16] %v158, 128
    %278 = vxpose.xlu0.b32.cont [11/16] %v161, 128
    %279 = vxpose.xlu0.b32.cont [12/16] %v164, 128
    %280 = vxpose.xlu0.b32.cont [13/16] %v167, 128
    %281 = vxpose.xlu0.b32.cont [14/16] %v170, 128
    %282 = vxpose.xlu0.b32.cont [15/16] %v173, 128
    %283 = vxpose.xlu0.b32.end [16/16] %v176, 128
    %v284 = vpop.trf.xlu0
    %v285 = vpop.trf.xlu0
    %v286 = vpop.trf.xlu0
    %v287 = vpop.trf.xlu0
    %v288 = vpop.trf.xlu0
    %v289 = vpop.trf.xlu0
    %v290 = vpop.trf.xlu0
    %v291 = vpop.trf.xlu0
    %v292 = vpop.trf.xlu0
    %v293 = vpop.trf.xlu0
    %v294 = vpop.trf.xlu0
    %v295 = vpop.trf.xlu0
    %v296 = vpop.trf.xlu0
    %v297 = vpop.trf.xlu0
    %v298 = vpop.trf.xlu0
    %v299 = vpop.trf.xlu0
    %300 = vxpose.xlu0.b32.start [1/16] %v177, 128
    %301 = vxpose.xlu0.b32.cont [2/16] %v180, 128
    %302 = vxpose.xlu0.b32.cont [3/16] %v183, 128
    %303 = vxpose.xlu0.b32.cont [4/16] %v186, 128
    %304 = vxpose.xlu0.b32.cont [5/16] %v189, 128
    %305 = vxpose.xlu0.b32.cont [6/16] %v192, 128
    %306 = vxpose.xlu0.b32.cont [7/16] %v195, 128
    %307 = vxpose.xlu0.b32.cont [8/16] %v198, 128
    %308 = vxpose.xlu0.b32.cont [9/16] %v201, 128
    %309 = vxpose.xlu0.b32.cont [10/16] 0.0, 128
    %310 = vxpose.xlu0.b32.cont [11/16] 0.0, 128
    %311 = vxpose.xlu0.b32.cont [12/16] 0.0, 128
    %312 = vxpose.xlu0.b32.cont [13/16] 0.0, 128
    %313 = vxpose.xlu0.b32.cont [14/16] 0.0, 128
    %314 = vxpose.xlu0.b32.cont [15/16] 0.0, 128
    %315 = vxpose.xlu0.b32.end [16/16] 0.0, 128
    %v316 = vpop.trf.xlu0
    %v317 = vpop.trf.xlu0
    %v318 = vpop.trf.xlu0
    %v319 = vpop.trf.xlu0
    %v320 = vpop.trf.xlu0
    %v321 = vpop.trf.xlu0
    %v322 = vpop.trf.xlu0
    %v323 = vpop.trf.xlu0
    %v324 = vpop.trf.xlu0
    %v325 = vpop.trf.xlu0
    %v326 = vpop.trf.xlu0
    %v327 = vpop.trf.xlu0
    %v328 = vpop.trf.xlu0
    %v329 = vpop.trf.xlu0
    %v330 = vpop.trf.xlu0
    %v331 = vpop.trf.xlu0
    %332 = vxpose.xlu0.b32.start [1/16] %v178, 128
    %333 = vxpose.xlu0.b32.cont [2/16] %v181, 128
    %334 = vxpose.xlu0.b32.cont [3/16] %v184, 128
    %335 = vxpose.xlu0.b32.cont [4/16] %v187, 128
    %336 = vxpose.xlu0.b32.cont [5/16] %v190, 128
    %337 = vxpose.xlu0.b32.cont [6/16] %v193, 128
    %338 = vxpose.xlu0.b32.cont [7/16] %v196, 128
    %339 = vxpose.xlu0.b32.cont [8/16] %v199, 128
    %340 = vxpose.xlu0.b32.cont [9/16] %v202, 128
    %341 = vxpose.xlu0.b32.cont [10/16] 0.0, 128
    %342 = vxpose.xlu0.b32.cont [11/16] 0.0, 128
    %343 = vxpose.xlu0.b32.cont [12/16] 0.0, 128
    %344 = vxpose.xlu0.b32.cont [13/16] 0.0, 128
    %345 = vxpose.xlu0.b32.cont [14/16] 0.0, 128
    %346 = vxpose.xlu0.b32.cont [15/16] 0.0, 128
    %347 = vxpose.xlu0.b32.end [16/16] 0.0, 128
    %v348 = vpop.trf.xlu0
    %v349 = vpop.trf.xlu0
    %v350 = vpop.trf.xlu0
    %v351 = vpop.trf.xlu0
    %v352 = vpop.trf.xlu0
    %v353 = vpop.trf.xlu0
    %v354 = vpop.trf.xlu0
    %v355 = vpop.trf.xlu0
    %v356 = vpop.trf.xlu0
    %v357 = vpop.trf.xlu0
    %v358 = vpop.trf.xlu0
    %v359 = vpop.trf.xlu0
    %v360 = vpop.trf.xlu0
    %v361 = vpop.trf.xlu0
    %v362 = vpop.trf.xlu0
    %v363 = vpop.trf.xlu0
    %364 = vxpose.xlu0.b32.start [1/16] %v179, 128
    %365 = vxpose.xlu0.b32.cont [2/16] %v182, 128
    %366 = vxpose.xlu0.b32.cont [3/16] %v185, 128
    %367 = vxpose.xlu0.b32.cont [4/16] %v188, 128
    %368 = vxpose.xlu0.b32.cont [5/16] %v191, 128
    %369 = vxpose.xlu0.b32.cont [6/16] %v194, 128
    %370 = vxpose.xlu0.b32.cont [7/16] %v197, 128
    %371 = vxpose.xlu0.b32.cont [8/16] %v200, 128
    %372 = vxpose.xlu0.b32.cont [9/16] %v203, 128
    %373 = vxpose.xlu0.b32.cont [10/16] 0.0, 128
    %374 = vxpose.xlu0.b32.cont [11/16] 0.0, 128
    %375 = vxpose.xlu0.b32.cont [12/16] 0.0, 128
    %376 = vxpose.xlu0.b32.cont [13/16] 0.0, 128
    %377 = vxpose.xlu0.b32.cont [14/16] 0.0, 128
    %378 = vxpose.xlu0.b32.cont [15/16] 0.0, 128
    %379 = vxpose.xlu0.b32.end [16/16] 0.0, 128
    %v380 = vpop.trf.xlu0
    %v381 = vpop.trf.xlu0
    %v382 = vpop.trf.xlu0
    %v383 = vpop.trf.xlu0
    %v384 = vpop.trf.xlu0
    %v385 = vpop.trf.xlu0
    %v386 = vpop.trf.xlu0
    %v387 = vpop.trf.xlu0
    %v388 = vpop.trf.xlu0
    %v389 = vpop.trf.xlu0
    %v390 = vpop.trf.xlu0
    %v391 = vpop.trf.xlu0
    %v392 = vpop.trf.xlu0
    %v393 = vpop.trf.xlu0
    %v394 = vpop.trf.xlu0
    %v395 = vpop.trf.xlu0
    %396 = vst [vmem:[%s2] sm:$0xff] %v220
    %vm397 = vcmask 556032
    %398 = vst.msk [vmem:[%s2 + $0x8] sm:$0xff] %vm397, %v316
    %399 = vst [vmem:[%s2 + $0x10] sm:$0xff] %v221
    %400 = vst.msk [vmem:[%s2 + $0x18] sm:$0xff] %vm397, %v317
    %401 = vst [vmem:[%s2 + $0x20] sm:$0xff] %v222
    %402 = vst.msk [vmem:[%s2 + $0x28] sm:$0xff] %vm397, %v318
    %403 = vst [vmem:[%s2 + $0x30] sm:$0xff] %v223
    %404 = vst.msk [vmem:[%s2 + $0x38] sm:$0xff] %vm397, %v319
    %405 = vst [vmem:[%s2 + $0x40] sm:$0xff] %v224
    %406 = vst.msk [vmem:[%s2 + $0x48] sm:$0xff] %vm397, %v320
    %407 = vst [vmem:[%s2 + $0x50] sm:$0xff] %v225
    %408 = vst.msk [vmem:[%s2 + $0x58] sm:$0xff] %vm397, %v321
    %409 = vst [vmem:[%s2 + $0x60] sm:$0xff] %v226
    %410 = vst.msk [vmem:[%s2 + $0x68] sm:$0xff] %vm397, %v322
    %411 = vst [vmem:[%s2 + $0x70] sm:$0xff] %v227
    %412 = vst.msk [vmem:[%s2 + $0x78] sm:$0xff] %vm397, %v323
    %413 = vst [vmem:[%s2 + $0x80] sm:$0xff] %v228
    %414 = vst.msk [vmem:[%s2 + $0x88] sm:$0xff] %vm397, %v324
    %415 = vst [vmem:[%s2 + $0x90] sm:$0xff] %v229
    %416 = vst.msk [vmem:[%s2 + $0x98] sm:$0xff] %vm397, %v325
    %417 = vst [vmem:[%s2 + $0xa0] sm:$0xff] %v230
    %418 = vst.msk [vmem:[%s2 + $0xa8] sm:$0xff] %vm397, %v326
    %419 = vst [vmem:[%s2 + $0xb0] sm:$0xff] %v231
    %420 = vst.msk [vmem:[%s2 + $0xb8] sm:$0xff] %vm397, %v327
    %421 = vst [vmem:[%s2 + $0xc0] sm:$0xff] %v232
    %422 = vst.msk [vmem:[%s2 + $0xc8] sm:$0xff] %vm397, %v328
    %423 = vst [vmem:[%s2 + $0xd0] sm:$0xff] %v233
    %424 = vst.msk [vmem:[%s2 + $0xd8] sm:$0xff] %vm397, %v329
    %425 = vst [vmem:[%s2 + $0xe0] sm:$0xff] %v234
    %426 = vst.msk [vmem:[%s2 + $0xe8] sm:$0xff] %vm397, %v330
    %427 = vst [vmem:[%s2 + $0xf0] sm:$0xff] %v235
    %428 = vst.msk [vmem:[%s2 + $0xf8] sm:$0xff] %vm397, %v331
    %429 = vst [vmem:[%s2 + $0x100] sm:$0xff] %v252
    %430 = vst.msk [vmem:[%s2 + $0x108] sm:$0xff] %vm397, %v348
    %431 = vst [vmem:[%s2 + $0x110] sm:$0xff] %v253
    %432 = vst.msk [vmem:[%s2 + $0x118] sm:$0xff] %vm397, %v349
    %433 = vst [vmem:[%s2 + $0x120] sm:$0xff] %v254
    %434 = vst.msk [vmem:[%s2 + $0x128] sm:$0xff] %vm397, %v350
    %435 = vst [vmem:[%s2 + $0x130] sm:$0xff] %v255
    %436 = vst.msk [vmem:[%s2 + $0x138] sm:$0xff] %vm397, %v351
    %437 = vst [vmem:[%s2 + $0x140] sm:$0xff] %v256
    %438 = vst.msk [vmem:[%s2 + $0x148] sm:$0xff] %vm397, %v352
    %439 = vst [vmem:[%s2 + $0x150] sm:$0xff] %v257
    %440 = vst.msk [vmem:[%s2 + $0x158] sm:$0xff] %vm397, %v353
    %441 = vst [vmem:[%s2 + $0x160] sm:$0xff] %v258
    %442 = vst.msk [vmem:[%s2 + $0x168] sm:$0xff] %vm397, %v354
    %443 = vst [vmem:[%s2 + $0x170] sm:$0xff] %v259
    %444 = vst.msk [vmem:[%s2 + $0x178] sm:$0xff] %vm397, %v355
    %445 = vst [vmem:[%s2 + $0x180] sm:$0xff] %v260
    %446 = vst.msk [vmem:[%s2 + $0x188] sm:$0xff] %vm397, %v356
    %447 = vst [vmem:[%s2 + $0x190] sm:$0xff] %v261
    %448 = vst.msk [vmem:[%s2 + $0x198] sm:$0xff] %vm397, %v357
    %449 = vst [vmem:[%s2 + $0x1a0] sm:$0xff] %v262
    %450 = vst.msk [vmem:[%s2 + $0x1a8] sm:$0xff] %vm397, %v358
    %451 = vst [vmem:[%s2 + $0x1b0] sm:$0xff] %v263
    %452 = vst.msk [vmem:[%s2 + $0x1b8] sm:$0xff] %vm397, %v359
    %453 = vst [vmem:[%s2 + $0x1c0] sm:$0xff] %v264
    %454 = vst.msk [vmem:[%s2 + $0x1c8] sm:$0xff] %vm397, %v360
    %455 = vst [vmem:[%s2 + $0x1d0] sm:$0xff] %v265
    %456 = vst.msk [vmem:[%s2 + $0x1d8] sm:$0xff] %vm397, %v361
    %457 = vst [vmem:[%s2 + $0x1e0] sm:$0xff] %v266
    %458 = vst.msk [vmem:[%s2 + $0x1e8] sm:$0xff] %vm397, %v362
    %459 = vst [vmem:[%s2 + $0x1f0] sm:$0xff] %v267
    %460 = vst.msk [vmem:[%s2 + $0x1f8] sm:$0xff] %vm397, %v363
    %461 = vst [vmem:[%s2 + $0x200] sm:$0xff] %v284
    %462 = vst.msk [vmem:[%s2 + $0x208] sm:$0xff] %vm397, %v380
    %463 = vst [vmem:[%s2 + $0x210] sm:$0xff] %v285
    %464 = vst.msk [vmem:[%s2 + $0x218] sm:$0xff] %vm397, %v381
    %465 = vst [vmem:[%s2 + $0x220] sm:$0xff] %v286
    %466 = vst.msk [vmem:[%s2 + $0x228] sm:$0xff] %vm397, %v382
    %467 = vst [vmem:[%s2 + $0x230] sm:$0xff] %v287
    %468 = vst.msk [vmem:[%s2 + $0x238] sm:$0xff] %vm397, %v383
    %469 = vst [vmem:[%s2 + $0x240] sm:$0xff] %v288
    %470 = vst.msk [vmem:[%s2 + $0x248] sm:$0xff] %vm397, %v384
    %471 = vst [vmem:[%s2 + $0x250] sm:$0xff] %v289
    %472 = vst.msk [vmem:[%s2 + $0x258] sm:$0xff] %vm397, %v385
    %473 = vst [vmem:[%s2 + $0x260] sm:$0xff] %v290
    %474 = vst.msk [vmem:[%s2 + $0x268] sm:$0xff] %vm397, %v386
    %475 = vst [vmem:[%s2 + $0x270] sm:$0xff] %v291
    %476 = vst.msk [vmem:[%s2 + $0x278] sm:$0xff] %vm397, %v387
    %477 = vst [vmem:[%s2 + $0x280] sm:$0xff] %v292
    %478 = vst.msk [vmem:[%s2 + $0x288] sm:$0xff] %vm397, %v388
    %479 = vst [vmem:[%s2 + $0x290] sm:$0xff] %v293
    %480 = vst.msk [vmem:[%s2 + $0x298] sm:$0xff] %vm397, %v389
    %481 = vst [vmem:[%s2 + $0x2a0] sm:$0xff] %v294
    %482 = vst.msk [vmem:[%s2 + $0x2a8] sm:$0xff] %vm397, %v390
    %483 = vst [vmem:[%s2 + $0x2b0] sm:$0xff] %v295
    %484 = vst.msk [vmem:[%s2 + $0x2b8] sm:$0xff] %vm397, %v391
    %485 = vst [vmem:[%s2 + $0x2c0] sm:$0xff] %v296
    %486 = vst.msk [vmem:[%s2 + $0x2c8] sm:$0xff] %vm397, %v392
    %487 = vst [vmem:[%s2 + $0x2d0] sm:$0xff] %v297
    %488 = vst.msk [vmem:[%s2 + $0x2d8] sm:$0xff] %vm397, %v393
    %489 = vst [vmem:[%s2 + $0x2e0] sm:$0xff] %v298
    %490 = vst.msk [vmem:[%s2 + $0x2e8] sm:$0xff] %vm397, %v394
    %491 = vst [vmem:[%s2 + $0x2f0] sm:$0xff] %v299
    %492 = vst.msk [vmem:[%s2 + $0x2f8] sm:$0xff] %vm397, %v395
    // Predicated region
    $region18: #{tpu_custom_call.1} parent=1 // pred_check
      _
    $region19: #{tpu_custom_call.1} parent=1 // pred_check_branch
      %494 = sbr.rel (0) target = $region21
    $region20: #{tpu_custom_call.1} parent=1 // pred_region
      _
    $region21: #{tpu_custom_call.1} parent=1 // pred_fallthru
      _
    // Predicated region
    $region22: #{tpu_custom_call.1} parent=1 // pred_check
      _
    $region23: #{tpu_custom_call.1} parent=1 // pred_check_branch
      %496 = sbr.rel (0) target = $region25
    $region24: #{tpu_custom_call.1} parent=1 // pred_region
      _
    $region25: #{tpu_custom_call.1} parent=1 // pred_fallthru
      _
    %497 = vsyncpa [#allocation3], 1
    %498 = vsyncpa [#allocation5], 1

</llo_original>
